<compile_context>
chip_gen: v6e
topology: v6e:2x2x1
jax: 0.10.0
libtpu: 0.0.40
codegen_flags: <defaults>
</compile_context>

<pallas_src>
import functools

import jax
import jax.numpy as jnp
import numpy as np
from jax.experimental import pallas as pl
from jax.experimental.pallas import tpu as pltpu

EPS = 1e-5


def _resblock_kernel(x_ref, w1_ref, w2_ref, g1_ref, be1_ref, g2_ref, be2_ref,
                     out_ref, *, K, pad, L):
    """x_ref: (C, B*L) with each batch element's L samples contiguous on lanes.
    w*_ref: (K*C, C) with row-block k holding tap-k's (C_out, C_in) matrix.
    g*/be*_ref: (C, 1) BatchNorm affine params."""
    x = x_ref[...].astype(jnp.float32)                       # (C, BL)
    C, BL = x.shape
    w1 = w1_ref[...].astype(jnp.float32)                     # (K*C, C), cast once
    w2 = w2_ref[...].astype(jnp.float32)

    # Per-slab (per batch element) column index and edge-validity masks -- computed
    # once per invocation and shared by both convolutions.
    col = jax.lax.broadcasted_iota(jnp.int32, (C, BL), 1) % L
    masks = {}
    for k in range(K):
        d = k - pad
        if d != 0:
            masks[d] = jnp.logical_and(col + d >= 0, col + d < L)

    def conv(v, w):
        # Same-padding Conv1d, no bias (cancelled by the following BN), as K
        # accumulated MXU matmuls: sum_k W_k @ shift_k(v).  No tap-stack concat.
        acc = None
        for k in range(K):
            d = k - pad
            if d == 0:
                tap = v
            else:
                rolled = pltpu.roll(v, shift=(-d) % BL, axis=1)   # rolled[:, l] = v[:, l+d]
                tap = jnp.where(masks[d], rolled, 0.0)            # zero the per-slab edges
            wk = w[k * C:(k + 1) * C, :]                          # (C_out, C_in), static slice
            part = jnp.dot(wk, tap, preferred_element_type=jnp.float32)
            acc = part if acc is None else acc + part
        return acc

    def bn(y, gamma, beta):
        # nn.BatchNorm1d training-mode statistics: per-channel over the whole
        # batch * length axis (all resident on lanes).  Two-pass -> numerically stable.
        mean = jnp.mean(y, axis=1, keepdims=True)                 # (C, 1)
        var = jnp.mean(jnp.square(y - mean), axis=1, keepdims=True)   # biased variance
        scale = gamma * jax.lax.rsqrt(var + EPS)
        return (y - mean) * scale + beta

    h = jnp.maximum(bn(conv(x, w1), g1_ref[...], be1_ref[...]), 0.0)   # conv1 -> bn1 -> relu
    y = bn(conv(h, w2), g2_ref[...], be2_ref[...])                     # conv2 -> bn2
    out_ref[...] = jnp.maximum(y + x, 0.0).astype(out_ref.dtype)       # +residual -> relu


def resblock1d_forward(x_ncl, params):
    """x_ncl: (B, C, L) (PyTorch NCL layout).  Params in PyTorch layouts:
    conv weights (C_out, C_in, K), conv biases (C,) [unused: cancelled by BN],
    BN weight/bias (C,)."""
    w1, _b1, g1, be1, w2, _b2, g2, be2 = params
    B, C, L = x_ncl.shape
    Cout, Cin, K = w1.shape
    assert Cout == C and Cin == C
    pad = K // 2
    BL = B * L

    # Stack batch slabs along the lane axis -> one wide lane-dense (C, B*L) slab.
    # (Wrapper-side layout plumbing so the kernel sees purely 2D lane-dense data.)
    x2d = jnp.transpose(x_ncl, (1, 0, 2)).reshape(C, BL)

    # (C_out, C_in, K) -> (K*C_out, C_in): row-block k is tap k's weight matrix.
    stack_w = lambda w: jnp.transpose(w, (2, 0, 1)).reshape(K * C, C).astype(jnp.float32)
    colv = lambda v: v.reshape(C, 1).astype(jnp.float32)

    # Generation-aware VMEM budget (~75% of physical VMEM; ~48 MiB on v7x, ~96 on v5e/v6e).
    try:
        vmem_cap = int(pltpu.get_tpu_info().vmem_capacity_bytes)
    except Exception:
        vmem_cap = 64 << 20
    budget = (vmem_cap * 3) // 4
    # Working set: in/out slabs (double-buffered) + ~6 live (C, BL) f32 temporaries + params.
    working = 10 * C * BL * 4 + 2 * (2 * K * C * C + 4 * C) * 4
    if working > budget:
        # TODO(synk): batch/L-tiled 3-phase fallback (see header) for very large inputs.
        raise NotImplementedError("ResBlock1D slab exceeds the single-pass VMEM budget")
    vmem_limit = int(min(budget, max(working + (4 << 20), 16 << 20)))

    kernel = functools.partial(_resblock_kernel, K=K, pad=pad, L=L)
    full2d = lambda shape: pl.BlockSpec(shape, lambda i: (0, 0))

    out2d = pl.pallas_call(
        kernel,
        out_shape=jax.ShapeDtypeStruct((C, BL), x_ncl.dtype),
        grid=(1,),
        in_specs=[full2d((C, BL)),
                  full2d((K * C, C)), full2d((K * C, C)),
                  full2d((C, 1)), full2d((C, 1)),
                  full2d((C, 1)), full2d((C, 1))],
        out_specs=full2d((C, BL)),
        compiler_params=pltpu.CompilerParams(
            dimension_semantics=("arbitrary",),
            vmem_limit_bytes=vmem_limit),
    )(x2d, stack_w(w1), stack_w(w2), colv(g1), colv(be1), colv(g2), colv(be2))

    return jnp.transpose(out2d.reshape(C, B, L), (1, 0, 2))


def reference_forward(x_ncl, params):
    """Pure-JAX reference (independent code path, full PyTorch semantics incl. conv
    biases, BatchNorm1d training mode with biased variance)."""
    w1, b1, g1, be1, w2, b2, g2, be2 = params

    def conv(x, w, b):
        pad = w.shape[-1] // 2
        y = jax.lax.conv_general_dilated(
            x, w, window_strides=(1,), padding=((pad, pad),),
            dimension_numbers=('NCH', 'OIH', 'NCH'))
        return y + b[None, :, None]

    def bn(y, g, be):
        mean = y.mean(axis=(0, 2), keepdims=True)
        var = ((y - mean) ** 2).mean(axis=(0, 2), keepdims=True)   # biased variance
        return (y - mean) * jax.lax.rsqrt(var + EPS) * g[None, :, None] + be[None, :, None]

    h = jax.nn.relu(bn(conv(x_ncl, w1, b1), g1, be1))
    o = bn(conv(h, w2, b2), g2, be2) + x_ncl
    return jax.nn.relu(o)


if __name__ == "__main__":
    B, C, L, K = 4, 8, 128, 3
    key = jax.random.PRNGKey(0)
    kw1, kb1, kw2, kb2, kg1, kbe1, kg2, kbe2, kx = jax.random.split(key, 9)

    # PyTorch-layout parameters (Conv1d: (C_out, C_in, K); biases / BN affine: (C,)).
    w1 = jax.random.normal(kw1, (C, C, K), jnp.float32) * 0.2
    b1 = jax.random.normal(kb1, (C,), jnp.float32) * 0.1
    w2 = jax.random.normal(kw2, (C, C, K), jnp.float32) * 0.2
    b2 = jax.random.normal(kb2, (C,), jnp.float32) * 0.1
    g1 = 1.0 + 0.1 * jax.random.normal(kg1, (C,), jnp.float32)
    be1 = 0.1 * jax.random.normal(kbe1, (C,), jnp.float32)
    g2 = 1.0 + 0.1 * jax.random.normal(kg2, (C,), jnp.float32)
    be2 = 0.1 * jax.random.normal(kbe2, (C,), jnp.float32)
    params = (w1, b1, g1, be1, w2, b2, g2, be2)

    x = jax.random.normal(kx, (B, C, L), jnp.float32)            # (B, C, L)

    out = jax.block_until_ready(resblock1d_forward(x, params))
    ref = jax.block_until_ready(reference_forward(x, params))

    np.testing.assert_allclose(np.asarray(out), np.asarray(ref), atol=1e-3, rtol=1e-3)
    print("KERNEL_OK")
</pallas_src>

<mosaic_0001>
module attributes {stable_mosaic.version = 11 : i64} {
  func.func @_resblock_kernel(%arg0: i32, %arg1: memref<8x512xf32, #tpu.memory_space<vmem>>, %arg2: memref<24x8xf32, #tpu.memory_space<vmem>>, %arg3: memref<24x8xf32, #tpu.memory_space<vmem>>, %arg4: memref<8x1xf32, #tpu.memory_space<vmem>>, %arg5: memref<8x1xf32, #tpu.memory_space<vmem>>, %arg6: memref<8x1xf32, #tpu.memory_space<vmem>>, %arg7: memref<8x1xf32, #tpu.memory_space<vmem>>, %arg8: memref<8x512xf32, #tpu.memory_space<vmem>>) attributes {dimension_semantics = [#tpu.dimension_semantics<arbitrary>], iteration_bounds = array<i64: 1>, scalar_prefetch = 0 : i64, scratch_operands = 0 : i64, tpu.core_type = #tpu.core_type<tc>, window_params = [{pipeline_mode = #tpu.pipeline_mode<synchronous>, transform_indices = @transform_0, window_bounds = array<i64: 8, 512>}, {pipeline_mode = #tpu.pipeline_mode<synchronous>, transform_indices = @transform_1, window_bounds = array<i64: 24, 8>}, {pipeline_mode = #tpu.pipeline_mode<synchronous>, transform_indices = @transform_2, window_bounds = array<i64: 24, 8>}, {pipeline_mode = #tpu.pipeline_mode<synchronous>, transform_indices = @transform_3, window_bounds = array<i64: 8, 1>}, {pipeline_mode = #tpu.pipeline_mode<synchronous>, transform_indices = @transform_4, window_bounds = array<i64: 8, 1>}, {pipeline_mode = #tpu.pipeline_mode<synchronous>, transform_indices = @transform_5, window_bounds = array<i64: 8, 1>}, {pipeline_mode = #tpu.pipeline_mode<synchronous>, transform_indices = @transform_6, window_bounds = array<i64: 8, 1>}, {pipeline_mode = #tpu.pipeline_mode<synchronous>, transform_indices = @transform_7, window_bounds = array<i64: 8, 512>}]} {
    %c0 = arith.constant 0 : index
    %c0_0 = arith.constant 0 : index
    %0 = vector.load %arg1[%c0, %c0_0] : memref<8x512xf32, #tpu.memory_space<vmem>>, vector<8x512xf32>
    %c0_1 = arith.constant 0 : index
    %c0_2 = arith.constant 0 : index
    %1 = vector.load %arg2[%c0_1, %c0_2] : memref<24x8xf32, #tpu.memory_space<vmem>>, vector<24x8xf32>
    %c0_3 = arith.constant 0 : index
    %c0_4 = arith.constant 0 : index
    %2 = vector.load %arg3[%c0_3, %c0_4] : memref<24x8xf32, #tpu.memory_space<vmem>>, vector<24x8xf32>
    %3 = tpu.iota {dimensions = array<i32: 1>} : vector<8x512xi32>
    %c128_i32 = arith.constant 128 : i32
    %c0_i32 = arith.constant 0 : i32
    %4 = arith.cmpi eq, %c128_i32, %c0_i32 : i32
    %c1_i32 = arith.constant 1 : i32
    %5 = arith.select %4, %c1_i32, %c128_i32 : i32
    %6 = vector.broadcast %5 : i32 to vector<8x512xi32>
    %7 = arith.remsi %3, %6 : vector<8x512xi32>
    %c0_i32_5 = arith.constant 0 : i32
    %8 = vector.broadcast %c0_i32_5 : i32 to vector<8x512xi32>
    %9 = arith.cmpi ne, %7, %8 : vector<8x512xi32>
    %c0_i32_6 = arith.constant 0 : i32
    %10 = vector.broadcast %c0_i32_6 : i32 to vector<8x512xi32>
    %11 = arith.cmpi slt, %7, %10 : vector<8x512xi32>
    %c0_i32_7 = arith.constant 0 : i32
    %12 = arith.cmpi slt, %5, %c0_i32_7 : i32
    %13 = vector.broadcast %12 : i1 to vector<8x512xi1>
    %14 = vector.broadcast %13 : vector<8x512xi1> to vector<8x512xi1>
    %15 = arith.xori %11, %14 : vector<8x512xi1>
    %16 = arith.andi %15, %9 : vector<8x512xi1>
    %17 = vector.broadcast %5 : i32 to vector<8x512xi32>
    %18 = arith.addi %7, %17 : vector<8x512xi32>
    %19 = arith.select %16, %18, %7 : vector<8x512xi1>, vector<8x512xi32>
    %c-1_i32 = arith.constant -1 : i32
    %20 = vector.broadcast %c-1_i32 : i32 to vector<8x512xi32>
    %21 = arith.addi %19, %20 : vector<8x512xi32>
    %c0_i32_8 = arith.constant 0 : i32
    %22 = vector.broadcast %c0_i32_8 : i32 to vector<8x512xi32>
    %23 = arith.cmpi sge, %21, %22 : vector<8x512xi32>
    %c-1_i32_9 = arith.constant -1 : i32
    %24 = vector.broadcast %c-1_i32_9 : i32 to vector<8x512xi32>
    %25 = arith.addi %19, %24 : vector<8x512xi32>
    %c128_i32_10 = arith.constant 128 : i32
    %26 = vector.broadcast %c128_i32_10 : i32 to vector<8x512xi32>
    %27 = arith.cmpi slt, %25, %26 : vector<8x512xi32>
    %28 = arith.andi %23, %27 : vector<8x512xi1>
    %c1_i32_11 = arith.constant 1 : i32
    %29 = vector.broadcast %c1_i32_11 : i32 to vector<8x512xi32>
    %30 = arith.addi %19, %29 : vector<8x512xi32>
    %c0_i32_12 = arith.constant 0 : i32
    %31 = vector.broadcast %c0_i32_12 : i32 to vector<8x512xi32>
    %32 = arith.cmpi sge, %30, %31 : vector<8x512xi32>
    %c1_i32_13 = arith.constant 1 : i32
    %33 = vector.broadcast %c1_i32_13 : i32 to vector<8x512xi32>
    %34 = arith.addi %19, %33 : vector<8x512xi32>
    %c128_i32_14 = arith.constant 128 : i32
    %35 = vector.broadcast %c128_i32_14 : i32 to vector<8x512xi32>
    %36 = arith.cmpi slt, %34, %35 : vector<8x512xi32>
    %37 = arith.andi %32, %36 : vector<8x512xi1>
    %c1_i32_15 = arith.constant 1 : i32
    %38 = tpu.dynamic_rotate %0 by %c1_i32_15 dim 1 : vector<8x512xf32>, i32 -> vector<8x512xf32>
    %cst = arith.constant 0.000000e+00 : f32
    %39 = vector.broadcast %cst : f32 to vector<8x512xf32>
    %40 = arith.select %28, %38, %39 : vector<8x512xi1>, vector<8x512xf32>
    %41 = vector.extract_strided_slice %1 {offsets = [0, 0], sizes = [8, 8], strides = [1, 1]} : vector<24x8xf32> to vector<8x8xf32>
    %cst_16 = arith.constant dense<0.000000e+00> : vector<8x512xf32>
    %42 = tpu.matmul %41, %40, %cst_16 {dimension_numbers = #tpu.dot_dimension_numbers<[1], [0], [0], [1], [0, 0, 1, 1], [], []>} : vector<8x8xf32>, vector<8x512xf32>, vector<8x512xf32> -> vector<8x512xf32>
    %43 = vector.extract_strided_slice %1 {offsets = [8, 0], sizes = [8, 8], strides = [1, 1]} : vector<24x8xf32> to vector<8x8xf32>
    %cst_17 = arith.constant dense<0.000000e+00> : vector<8x512xf32>
    %44 = tpu.matmul %43, %0, %cst_17 {dimension_numbers = #tpu.dot_dimension_numbers<[1], [0], [0], [1], [0, 0, 1, 1], [], []>} : vector<8x8xf32>, vector<8x512xf32>, vector<8x512xf32> -> vector<8x512xf32>
    %45 = arith.addf %42, %44 : vector<8x512xf32>
    %c511_i32 = arith.constant 511 : i32
    %46 = tpu.dynamic_rotate %0 by %c511_i32 dim 1 : vector<8x512xf32>, i32 -> vector<8x512xf32>
    %cst_18 = arith.constant 0.000000e+00 : f32
    %47 = vector.broadcast %cst_18 : f32 to vector<8x512xf32>
    %48 = arith.select %37, %46, %47 : vector<8x512xi1>, vector<8x512xf32>
    %49 = vector.extract_strided_slice %1 {offsets = [16, 0], sizes = [8, 8], strides = [1, 1]} : vector<24x8xf32> to vector<8x8xf32>
    %cst_19 = arith.constant dense<0.000000e+00> : vector<8x512xf32>
    %50 = tpu.matmul %49, %48, %cst_19 {dimension_numbers = #tpu.dot_dimension_numbers<[1], [0], [0], [1], [0, 0, 1, 1], [], []>} : vector<8x8xf32>, vector<8x512xf32>, vector<8x512xf32> -> vector<8x512xf32>
    %51 = arith.addf %45, %50 : vector<8x512xf32>
    %c0_20 = arith.constant 0 : index
    %c0_21 = arith.constant 0 : index
    %52 = vector.load %arg4[%c0_20, %c0_21] : memref<8x1xf32, #tpu.memory_space<vmem>>, vector<8x1xf32>
    %c0_22 = arith.constant 0 : index
    %c0_23 = arith.constant 0 : index
    %53 = vector.load %arg5[%c0_22, %c0_23] : memref<8x1xf32, #tpu.memory_space<vmem>>, vector<8x1xf32>
    %cst_24 = arith.constant dense<0.000000e+00> : vector<8xf32>
    %54 = vector.multi_reduction <add>, %51, %cst_24 [1] : vector<8x512xf32> to vector<8xf32>
    %55 = vector.shape_cast %54 : vector<8xf32> to vector<8x1xf32>
    %cst_25 = arith.constant 5.120000e+02 : f32
    %56 = vector.broadcast %cst_25 : f32 to vector<8x1xf32>
    %57 = arith.divf %55, %56 : vector<8x1xf32>
    %58 = vector.broadcast %57 : vector<8x1xf32> to vector<8x512xf32>
    %59 = arith.subf %51, %58 : vector<8x512xf32>
    %60 = arith.mulf %59, %59 : vector<8x512xf32>
    %cst_26 = arith.constant dense<0.000000e+00> : vector<8xf32>
    %61 = vector.multi_reduction <add>, %60, %cst_26 [1] : vector<8x512xf32> to vector<8xf32>
    %62 = vector.shape_cast %61 : vector<8xf32> to vector<8x1xf32>
    %cst_27 = arith.constant 5.120000e+02 : f32
    %63 = vector.broadcast %cst_27 : f32 to vector<8x1xf32>
    %64 = arith.divf %62, %63 : vector<8x1xf32>
    %cst_28 = arith.constant 9.99999974E-6 : f32
    %65 = vector.broadcast %cst_28 : f32 to vector<8x1xf32>
    %66 = arith.addf %64, %65 : vector<8x1xf32>
    %67 = math.rsqrt %66 : vector<8x1xf32>
    %68 = arith.mulf %52, %67 : vector<8x1xf32>
    %69 = vector.broadcast %57 : vector<8x1xf32> to vector<8x512xf32>
    %70 = arith.subf %51, %69 : vector<8x512xf32>
    %71 = vector.broadcast %68 : vector<8x1xf32> to vector<8x512xf32>
    %72 = arith.mulf %70, %71 : vector<8x512xf32>
    %73 = vector.broadcast %53 : vector<8x1xf32> to vector<8x512xf32>
    %74 = arith.addf %72, %73 : vector<8x512xf32>
    %cst_29 = arith.constant 0.000000e+00 : f32
    %75 = vector.broadcast %cst_29 : f32 to vector<8x512xf32>
    %76 = arith.maximumf %74, %75 : vector<8x512xf32>
    %c1_i32_30 = arith.constant 1 : i32
    %77 = tpu.dynamic_rotate %76 by %c1_i32_30 dim 1 : vector<8x512xf32>, i32 -> vector<8x512xf32>
    %cst_31 = arith.constant 0.000000e+00 : f32
    %78 = vector.broadcast %cst_31 : f32 to vector<8x512xf32>
    %79 = arith.select %28, %77, %78 : vector<8x512xi1>, vector<8x512xf32>
    %80 = vector.extract_strided_slice %2 {offsets = [0, 0], sizes = [8, 8], strides = [1, 1]} : vector<24x8xf32> to vector<8x8xf32>
    %cst_32 = arith.constant dense<0.000000e+00> : vector<8x512xf32>
    %81 = tpu.matmul %80, %79, %cst_32 {dimension_numbers = #tpu.dot_dimension_numbers<[1], [0], [0], [1], [0, 0, 1, 1], [], []>} : vector<8x8xf32>, vector<8x512xf32>, vector<8x512xf32> -> vector<8x512xf32>
    %82 = vector.extract_strided_slice %2 {offsets = [8, 0], sizes = [8, 8], strides = [1, 1]} : vector<24x8xf32> to vector<8x8xf32>
    %cst_33 = arith.constant dense<0.000000e+00> : vector<8x512xf32>
    %83 = tpu.matmul %82, %76, %cst_33 {dimension_numbers = #tpu.dot_dimension_numbers<[1], [0], [0], [1], [0, 0, 1, 1], [], []>} : vector<8x8xf32>, vector<8x512xf32>, vector<8x512xf32> -> vector<8x512xf32>
    %84 = arith.addf %81, %83 : vector<8x512xf32>
    %c511_i32_34 = arith.constant 511 : i32
    %85 = tpu.dynamic_rotate %76 by %c511_i32_34 dim 1 : vector<8x512xf32>, i32 -> vector<8x512xf32>
    %cst_35 = arith.constant 0.000000e+00 : f32
    %86 = vector.broadcast %cst_35 : f32 to vector<8x512xf32>
    %87 = arith.select %37, %85, %86 : vector<8x512xi1>, vector<8x512xf32>
    %88 = vector.extract_strided_slice %2 {offsets = [16, 0], sizes = [8, 8], strides = [1, 1]} : vector<24x8xf32> to vector<8x8xf32>
    %cst_36 = arith.constant dense<0.000000e+00> : vector<8x512xf32>
    %89 = tpu.matmul %88, %87, %cst_36 {dimension_numbers = #tpu.dot_dimension_numbers<[1], [0], [0], [1], [0, 0, 1, 1], [], []>} : vector<8x8xf32>, vector<8x512xf32>, vector<8x512xf32> -> vector<8x512xf32>
    %90 = arith.addf %84, %89 : vector<8x512xf32>
    %c0_37 = arith.constant 0 : index
    %c0_38 = arith.constant 0 : index
    %91 = vector.load %arg6[%c0_37, %c0_38] : memref<8x1xf32, #tpu.memory_space<vmem>>, vector<8x1xf32>
    %c0_39 = arith.constant 0 : index
    %c0_40 = arith.constant 0 : index
    %92 = vector.load %arg7[%c0_39, %c0_40] : memref<8x1xf32, #tpu.memory_space<vmem>>, vector<8x1xf32>
    %cst_41 = arith.constant dense<0.000000e+00> : vector<8xf32>
    %93 = vector.multi_reduction <add>, %90, %cst_41 [1] : vector<8x512xf32> to vector<8xf32>
    %94 = vector.shape_cast %93 : vector<8xf32> to vector<8x1xf32>
    %cst_42 = arith.constant 5.120000e+02 : f32
    %95 = vector.broadcast %cst_42 : f32 to vector<8x1xf32>
    %96 = arith.divf %94, %95 : vector<8x1xf32>
    %97 = vector.broadcast %96 : vector<8x1xf32> to vector<8x512xf32>
    %98 = arith.subf %90, %97 : vector<8x512xf32>
    %99 = arith.mulf %98, %98 : vector<8x512xf32>
    %cst_43 = arith.constant dense<0.000000e+00> : vector<8xf32>
    %100 = vector.multi_reduction <add>, %99, %cst_43 [1] : vector<8x512xf32> to vector<8xf32>
    %101 = vector.shape_cast %100 : vector<8xf32> to vector<8x1xf32>
    %cst_44 = arith.constant 5.120000e+02 : f32
    %102 = vector.broadcast %cst_44 : f32 to vector<8x1xf32>
    %103 = arith.divf %101, %102 : vector<8x1xf32>
    %cst_45 = arith.constant 9.99999974E-6 : f32
    %104 = vector.broadcast %cst_45 : f32 to vector<8x1xf32>
    %105 = arith.addf %103, %104 : vector<8x1xf32>
    %106 = math.rsqrt %105 : vector<8x1xf32>
    %107 = arith.mulf %91, %106 : vector<8x1xf32>
    %108 = vector.broadcast %96 : vector<8x1xf32> to vector<8x512xf32>
    %109 = arith.subf %90, %108 : vector<8x512xf32>
    %110 = vector.broadcast %107 : vector<8x1xf32> to vector<8x512xf32>
    %111 = arith.mulf %109, %110 : vector<8x512xf32>
    %112 = vector.broadcast %92 : vector<8x1xf32> to vector<8x512xf32>
    %113 = arith.addf %111, %112 : vector<8x512xf32>
    %114 = arith.addf %113, %0 : vector<8x512xf32>
    %cst_46 = arith.constant 0.000000e+00 : f32
    %115 = vector.broadcast %cst_46 : f32 to vector<8x512xf32>
    %116 = arith.maximumf %114, %115 : vector<8x512xf32>
    %c0_47 = arith.constant 0 : index
    %c0_48 = arith.constant 0 : index
    %117 = vector.load %arg8[%c0_47, %c0_48] : memref<8x512xf32, #tpu.memory_space<vmem>>, vector<8x512xf32>
    tpu.vector_store %arg8[%c0_47, %c0_48], %116 {strides = array<i32>} : memref<8x512xf32, #tpu.memory_space<vmem>>, vector<8x512xf32>,
    return
  }
  func.func @transform_0(%arg0: i32) -> (i32, i32) {
    %c0_i32 = arith.constant 0 : i32
    %c0_i32_0 = arith.constant 0 : i32
    %c0_i32_1 = arith.constant 0 : i32
    return %c0_i32, %c0_i32_0 : i32, i32
  }
  func.func @transform_1(%arg0: i32) -> (i32, i32) {
    %c0_i32 = arith.constant 0 : i32
    %c0_i32_0 = arith.constant 0 : i32
    %c0_i32_1 = arith.constant 0 : i32
    return %c0_i32, %c0_i32_0 : i32, i32
  }
  func.func @transform_2(%arg0: i32) -> (i32, i32) {
    %c0_i32 = arith.constant 0 : i32
    %c0_i32_0 = arith.constant 0 : i32
    %c0_i32_1 = arith.constant 0 : i32
    return %c0_i32, %c0_i32_0 : i32, i32
  }
  func.func @transform_3(%arg0: i32) -> (i32, i32) {
    %c0_i32 = arith.constant 0 : i32
    %c0_i32_0 = arith.constant 0 : i32
    %c0_i32_1 = arith.constant 0 : i32
    return %c0_i32, %c0_i32_0 : i32, i32
  }
  func.func @transform_4(%arg0: i32) -> (i32, i32) {
    %c0_i32 = arith.constant 0 : i32
    %c0_i32_0 = arith.constant 0 : i32
    %c0_i32_1 = arith.constant 0 : i32
    return %c0_i32, %c0_i32_0 : i32, i32
  }
  func.func @transform_5(%arg0: i32) -> (i32, i32) {
    %c0_i32 = arith.constant 0 : i32
    %c0_i32_0 = arith.constant 0 : i32
    %c0_i32_1 = arith.constant 0 : i32
    return %c0_i32, %c0_i32_0 : i32, i32
  }
  func.func @transform_6(%arg0: i32) -> (i32, i32) {
    %c0_i32 = arith.constant 0 : i32
    %c0_i32_0 = arith.constant 0 : i32
    %c0_i32_1 = arith.constant 0 : i32
    return %c0_i32, %c0_i32_0 : i32, i32
  }
  func.func @transform_7(%arg0: i32) -> (i32, i32) {
    %c0_i32 = arith.constant 0 : i32
    %c0_i32_0 = arith.constant 0 : i32
    %c0_i32_1 = arith.constant 0 : i32
    return %c0_i32, %c0_i32_0 : i32, i32
  }
}

</mosaic_0001>

<llo_original>
// kernel: tpu_custom_call.1
$region0: #{tpu_custom_call.1}
  #allocation0 [shape = 'u32[]', space=smem, size = 0x4, offset = 0x4, fixed_abs, tag = 'smem constant byte address 0x4 - core index']
  #allocation1 [shape = 'u32[144,128]{1,0:T(1,128)}', space=vmem, size = 0x12000, scoped, tag = 'internal scratch']
  %s0 = inlined_call_operand.vmem [shape: f32[8,512], index: 0, kind: input, shape index: {}]
  %s1 = inlined_call_operand.vmem [shape: f32[24,8], index: 1, kind: input, shape index: {}]
  %s2 = inlined_call_operand.vmem [shape: f32[24,8], index: 2, kind: input, shape index: {}]
  %s3 = inlined_call_operand.vmem [shape: f32[8,1], index: 3, kind: input, shape index: {}]
  %s4 = inlined_call_operand.vmem [shape: f32[8,1], index: 4, kind: input, shape index: {}]
  %s5 = inlined_call_operand.vmem [shape: f32[8,1], index: 5, kind: input, shape index: {}]
  %s6 = inlined_call_operand.vmem [shape: f32[8,1], index: 6, kind: input, shape index: {}]
  %s7 = inlined_call_operand.hbm [shape: f32[8,512], index: 7, kind: output, shape index: {}]
  %s8 = sld [smem:[#allocation0]]
  $region38: #{tpu_custom_call.1} parent=0
    _
  %s10 = ssub.s32 1, %s8
  %s11 = scalar_select 0, %s10, %s8
  $region1: #{tpu_custom_call.1} parent=0
    #allocation2 [shape = 'u8[16384]{0}', space=vmem, size = 0x4000, scoped, tag = 'output window, operand 0, single buffered']
    #allocation3 [shape = 's32[1]{0}', space=sflag, size = 0x4, scoped, tag = 'scoped memory for tpu_custom_call.1']
    %12 = vsyncpa [#allocation3], 0
    // Predicated region
    $region2: #{tpu_custom_call.1} parent=1 // pred_check
      _
    $region3: #{tpu_custom_call.1} parent=1 // pred_check_branch
      %14 = sbr.rel (0) target = $region5
    $region4: #{tpu_custom_call.1} parent=1 // pred_region
      _
    $region5: #{tpu_custom_call.1} parent=1 // pred_fallthru
      _
    // Predicated region
    $region6: #{tpu_custom_call.1} parent=1 // pred_check
      _
    $region7: #{tpu_custom_call.1} parent=1 // pred_check_branch
      %16 = sbr.rel (0) target = $region9
    $region8: #{tpu_custom_call.1} parent=1 // pred_region
      _
    $region9: #{tpu_custom_call.1} parent=1 // pred_fallthru
      _
    // Predicated region
    $region10: #{tpu_custom_call.1} parent=1 // pred_check
      _
    $region11: #{tpu_custom_call.1} parent=1 // pred_check_branch
      %18 = sbr.rel (0) target = $region13
    $region12: #{tpu_custom_call.1} parent=1 // pred_region
      _
    $region13: #{tpu_custom_call.1} parent=1 // pred_fallthru
      _
    // Predicated region
    $region14: #{tpu_custom_call.1} parent=1 // pred_check
      _
    $region15: #{tpu_custom_call.1} parent=1 // pred_check_branch
      %20 = sbr.rel (0) target = $region17
    $region16: #{tpu_custom_call.1} parent=1 // pred_region
      _
    $region17: #{tpu_custom_call.1} parent=1 // pred_fallthru
      _
    // Predicated region
    $region18: #{tpu_custom_call.1} parent=1 // pred_check
      _
    $region19: #{tpu_custom_call.1} parent=1 // pred_check_branch
      %22 = sbr.rel (0) target = $region21
    $region20: #{tpu_custom_call.1} parent=1 // pred_region
      _
    $region21: #{tpu_custom_call.1} parent=1 // pred_fallthru
      _
    // Predicated region
    $region22: #{tpu_custom_call.1} parent=1 // pred_check
      _
    $region23: #{tpu_custom_call.1} parent=1 // pred_check_branch
      %24 = sbr.rel (0) target = $region25
    $region24: #{tpu_custom_call.1} parent=1 // pred_region
      _
    $region25: #{tpu_custom_call.1} parent=1 // pred_fallthru
      _
    // Predicated region
    $region26: #{tpu_custom_call.1} parent=1 // pred_check
      _
    $region27: #{tpu_custom_call.1} parent=1 // pred_check_branch
      %26 = sbr.rel (0) target = $region29
    $region28: #{tpu_custom_call.1} parent=1 // pred_region
      _
    $region29: #{tpu_custom_call.1} parent=1 // pred_fallthru
      _
    %v27 = vld [vmem:[%s0] sm:$0xff]
    %v28 = vld [vmem:[%s0 + $0x8] sm:$0xff]
    %v29 = vld [vmem:[%s0 + $0x10] sm:$0xff]
    %v30 = vld [vmem:[%s0 + $0x18] sm:$0xff]
    %v31 = vld [vmem:[%s1] sm:$0xff]
    %v32 = vld [vmem:[%s1 + $0x8] sm:$0xff]
    %v33 = vld [vmem:[%s1 + $0x10] sm:$0xff]
    %v34 = vld [vmem:[%s2] sm:$0xff]
    %v35 = vld [vmem:[%s2 + $0x8] sm:$0xff]
    %v36 = vld [vmem:[%s2 + $0x10] sm:$0xff]
    %v37 = vlaneseq
    %v38 = vand.u32 %v37, 127
    %v39 = vadd.s32 %v38, 128
    %v40 = vadd.s32 %v38, 256
    %v41 = vadd.s32 %v38, 384
    %vm42 = vcmp.lt.s32.totalorder %v38, 0
    %v43 = vsub.s32 0, %v38
    %v44 = vsel %vm42, %v43, %v38
    %v45 = vshrl.u32 %v44, 7
    %v46 = vand.u32 %v44, 127
    %v47 = vsub.s32 0, %v46
    %v48 = vsel %vm42, %v47, %v46
    %vm49 = vcmp.lt.s32.totalorder %v39, 0
    %v50 = vsub.s32 0, %v39
    %v51 = vsel %vm49, %v50, %v39
    %v52 = vshrl.u32 %v51, 7
    %v53 = vand.u32 %v51, 127
    %v54 = vsub.s32 0, %v53
    %v55 = vsel %vm49, %v54, %v53
    %vm56 = vcmp.lt.s32.totalorder %v40, 0
    %v57 = vsub.s32 0, %v40
    %v58 = vsel %vm56, %v57, %v40
    %v59 = vshrl.u32 %v58, 7
    %v60 = vand.u32 %v58, 127
    %v61 = vsub.s32 0, %v60
    %v62 = vsel %vm56, %v61, %v60
    %vm63 = vcmp.lt.s32.totalorder %v41, 0
    %v64 = vsub.s32 0, %v41
    %v65 = vsel %vm63, %v64, %v41
    %v66 = vshrl.u32 %v65, 7
    %v67 = vand.u32 %v65, 127
    %v68 = vsub.s32 0, %v67
    %v69 = vsel %vm63, %v68, %v67
    %vm70 = vcmp.ne.s32.totalorder %v48, 0
    %vm71 = vcmp.ne.s32.totalorder %v55, 0
    %vm72 = vcmp.ne.s32.totalorder %v62, 0
    %vm73 = vcmp.ne.s32.totalorder %v69, 0
    %vm74 = vcmp.lt.s32.totalorder %v48, 0
    %vm75 = vcmp.lt.s32.totalorder %v55, 0
    %vm76 = vcmp.lt.s32.totalorder %v62, 0
    %vm77 = vcmp.lt.s32.totalorder %v69, 0
    %vm78 = vmand %vm74, %vm70
    %vm79 = vmand %vm75, %vm71
    %vm80 = vmand %vm76, %vm72
    %vm81 = vmand %vm77, %vm73
    %v82 = vadd.s32 %v48, 128
    %v83 = vadd.s32 %v55, 128
    %v84 = vadd.s32 %v62, 128
    %v85 = vadd.s32 %v69, 128
    %v86 = vsel %vm78, %v82, %v48
    %v87 = vsel %vm79, %v83, %v55
    %v88 = vsel %vm80, %v84, %v62
    %v89 = vsel %vm81, %v85, %v69
    %v90 = vadd.s32 %v86, 4294967295
    %v91 = vadd.s32 %v87, 4294967295
    %v92 = vadd.s32 %v88, 4294967295
    %v93 = vadd.s32 %v89, 4294967295
    %vm94 = vcmp.ge.s32.totalorder %v90, 0
    %vm95 = vcmp.ge.s32.totalorder %v91, 0
    %vm96 = vcmp.ge.s32.totalorder %v92, 0
    %vm97 = vcmp.ge.s32.totalorder %v93, 0
    %vm98 = vcmp.lt.s32.totalorder %v90, 128
    %vm99 = vcmp.lt.s32.totalorder %v91, 128
    %vm100 = vcmp.lt.s32.totalorder %v92, 128
    %vm101 = vcmp.lt.s32.totalorder %v93, 128
    %vm102 = vmand %vm94, %vm98
    %vm103 = vmand %vm95, %vm99
    %vm104 = vmand %vm96, %vm100
    %vm105 = vmand %vm97, %vm101
    %v106 = vadd.s32 %v86, 1
    %v107 = vadd.s32 %v87, 1
    %v108 = vadd.s32 %v88, 1
    %v109 = vadd.s32 %v89, 1
    %vm110 = vcmp.ge.s32.totalorder %v106, 0
    %vm111 = vcmp.ge.s32.totalorder %v107, 0
    %vm112 = vcmp.ge.s32.totalorder %v108, 0
    %vm113 = vcmp.ge.s32.totalorder %v109, 0
    %vm114 = vcmp.lt.s32.totalorder %v106, 128
    %vm115 = vcmp.lt.s32.totalorder %v107, 128
    %vm116 = vcmp.lt.s32.totalorder %v108, 128
    %vm117 = vcmp.lt.s32.totalorder %v109, 128
    %vm118 = vmand %vm110, %vm114
    %vm119 = vmand %vm111, %vm115
    %vm120 = vmand %vm112, %vm116
    %vm121 = vmand %vm113, %vm117
    %122 = vrot.lane.b32.xlu0 %v27, 1
    %v123 = vpop.permute.xlu0 %122
    %124 = vrot.lane.b32.xlu0 %v28, 1
    %v125 = vpop.permute.xlu0 %124
    %126 = vrot.lane.b32.xlu0 %v29, 1
    %v127 = vpop.permute.xlu0 %126
    %128 = vrot.lane.b32.xlu0 %v30, 1
    %v129 = vpop.permute.xlu0 %128
    %vm130 = vcmp.lt.s32.totalorder %v38, 1
    %v131 = vsel %vm130, %v127, %v129
    %v132 = vsel %vm130, %v125, %v127
    %v133 = vsel %vm130, %v123, %v125
    %v134 = vsel %vm130, %v129, %v123
    %v135 = vsel %vm102, %v134, 0.0
    %v136 = vsel %vm103, %v133, 0.0
    %v137 = vsel %vm104, %v132, 0.0
    %v138 = vsel %vm105, %v131, 0.0
    %vm139 = vcmask 64512
    %v141 = vsel %vm139, %v32, 0
    %143 = vmatprep.subr.mxu0 0.0
    %144 = vmatpush1.msra.mxu0 0.0
    %145 = vmatprep.subr.mxu0 0.0
    %146 = vmatpush1.msra.mxu0 0.0
    %147 = vmatprep.subr.mxu0 0.0
    %148 = vmatpush1.msra.mxu0 0.0
    %149 = vmatprep.subr.mxu0 0.0
    %150 = vmatpush1.msra.mxu0 0.0
    %151 = vmatprep.subr.mxu0 0.0
    %152 = vmatpush1.msra.mxu0 0.0
    %153 = vmatprep.subr.mxu0 0.0
    %154 = vmatpush1.msra.mxu0 0.0
    %155 = vmatprep.subr.mxu0 0.0
    %156 = vmatpush1.msra.mxu0 0.0
    %157 = vmatprep.subr.mxu0 0.0
    %158 = vmatpush1.msra.mxu0 0.0
    %159 = vmatprep.subr.mxu0 0.0
    %160 = vmatpush1.msra.mxu0 0.0
    %161 = vmatprep.subr.mxu0 0.0
    %162 = vmatpush1.msra.mxu0 0.0
    %163 = vmatprep.subr.mxu0 0.0
    %164 = vmatpush1.msra.mxu0 0.0
    %165 = vmatprep.subr.mxu0 0.0
    %166 = vmatpush1.msra.mxu0 0.0
    %167 = vmatprep.subr.mxu0 0.0
    %168 = vmatpush1.msra.mxu0 0.0
    %169 = vmatprep.subr.mxu0 0.0
    %170 = vmatpush1.msra.mxu0 0.0
    %171 = vmatprep.subr.mxu0 0.0
    %172 = vmatpush1.msra.mxu0 0.0
    %173 = vmatprep.subr.mxu0 %v28
    %174 = vmatpush1.msra.mxu0 %v27
    %175 = vmatprep.subr.mxu0 0.0
    %176 = vmatpush2.msra.mxu0 0.0
    %177 = vmatprep.subr.mxu0 0.0
    %178 = vmatpush2.msra.mxu0 0.0
    %179 = vmatprep.subr.mxu0 0.0
    %180 = vmatpush2.msra.mxu0 0.0
    %181 = vmatprep.subr.mxu0 0.0
    %182 = vmatpush2.msra.mxu0 0.0
    %183 = vmatprep.subr.mxu0 0.0
    %184 = vmatpush2.msra.mxu0 0.0
    %185 = vmatprep.subr.mxu0 0.0
    %186 = vmatpush2.msra.mxu0 0.0
    %187 = vmatprep.subr.mxu0 0.0
    %188 = vmatpush2.msra.mxu0 0.0
    %189 = vmatprep.subr.mxu0 0.0
    %190 = vmatpush2.msra.mxu0 0.0
    %191 = vmatprep.subr.mxu0 0.0
    %192 = vmatpush2.msra.mxu0 0.0
    %193 = vmatprep.subr.mxu0 0.0
    %194 = vmatpush2.msra.mxu0 0.0
    %195 = vmatprep.subr.mxu0 0.0
    %196 = vmatpush2.msra.mxu0 0.0
    %197 = vmatprep.subr.mxu0 0.0
    %198 = vmatpush2.msra.mxu0 0.0
    %199 = vmatprep.subr.mxu0 0.0
    %200 = vmatpush2.msra.mxu0 0.0
    %201 = vmatprep.subr.mxu0 0.0
    %202 = vmatpush2.msra.mxu0 0.0
    %203 = vmatprep.subr.mxu0 0.0
    %204 = vmatpush2.msra.mxu0 0.0
    %205 = vmatprep.subr.mxu0 0.0
    %206 = vmatpush2.msra.mxu0 0.0
    %207 = vmatprep.mubr.f32.mxu0 0.0
    %208 = vmatmul.mubr.f32.gmra.mxu0 %v141
    %v209 = vpop.f32.mrf.mxu0
    %v210 = vadd.f32 0.0, %v209
    %v211 = vpop.f32.mrf.mxu0
    %v212 = vadd.f32 0.0, %v211
    %213 = vdwg.mxu0
    %214 = vmatprep.subr.mxu0 0.0
    %215 = vmatpush1.msra.mxu0 0.0
    %216 = vmatprep.subr.mxu0 0.0
    %217 = vmatpush1.msra.mxu0 0.0
    %218 = vmatprep.subr.mxu0 0.0
    %219 = vmatpush1.msra.mxu0 0.0
    %220 = vmatprep.subr.mxu0 0.0
    %221 = vmatpush1.msra.mxu0 0.0
    %222 = vmatprep.subr.mxu0 0.0
    %223 = vmatpush1.msra.mxu0 0.0
    %224 = vmatprep.subr.mxu0 0.0
    %225 = vmatpush1.msra.mxu0 0.0
    %226 = vmatprep.subr.mxu0 0.0
    %227 = vmatpush1.msra.mxu0 0.0
    %228 = vmatprep.subr.mxu0 0.0
    %229 = vmatpush1.msra.mxu0 0.0
    %230 = vmatprep.subr.mxu0 0.0
    %231 = vmatpush1.msra.mxu0 0.0
    %232 = vmatprep.subr.mxu0 0.0
    %233 = vmatpush1.msra.mxu0 0.0
    %234 = vmatprep.subr.mxu0 0.0
    %235 = vmatpush1.msra.mxu0 0.0
    %236 = vmatprep.subr.mxu0 0.0
    %237 = vmatpush1.msra.mxu0 0.0
    %238 = vmatprep.subr.mxu0 0.0
    %239 = vmatpush1.msra.mxu0 0.0
    %240 = vmatprep.subr.mxu0 0.0
    %241 = vmatpush1.msra.mxu0 0.0
    %242 = vmatprep.subr.mxu0 0.0
    %243 = vmatpush1.msra.mxu0 0.0
    %244 = vmatprep.subr.mxu0 %v30
    %245 = vmatpush1.msra.mxu0 %v29
    %246 = vmatprep.subr.mxu0 0.0
    %247 = vmatpush2.msra.mxu0 0.0
    %248 = vmatprep.subr.mxu0 0.0
    %249 = vmatpush2.msra.mxu0 0.0
    %250 = vmatprep.subr.mxu0 0.0
    %251 = vmatpush2.msra.mxu0 0.0
    %252 = vmatprep.subr.mxu0 0.0
    %253 = vmatpush2.msra.mxu0 0.0
    %254 = vmatprep.subr.mxu0 0.0
    %255 = vmatpush2.msra.mxu0 0.0
    %256 = vmatprep.subr.mxu0 0.0
    %257 = vmatpush2.msra.mxu0 0.0
    %258 = vmatprep.subr.mxu0 0.0
    %259 = vmatpush2.msra.mxu0 0.0
    %260 = vmatprep.subr.mxu0 0.0
    %261 = vmatpush2.msra.mxu0 0.0
    %262 = vmatprep.subr.mxu0 0.0
    %263 = vmatpush2.msra.mxu0 0.0
    %264 = vmatprep.subr.mxu0 0.0
    %265 = vmatpush2.msra.mxu0 0.0
    %266 = vmatprep.subr.mxu0 0.0
    %267 = vmatpush2.msra.mxu0 0.0
    %268 = vmatprep.subr.mxu0 0.0
    %269 = vmatpush2.msra.mxu0 0.0
    %270 = vmatprep.subr.mxu0 0.0
    %271 = vmatpush2.msra.mxu0 0.0
    %272 = vmatprep.subr.mxu0 0.0
    %273 = vmatpush2.msra.mxu0 0.0
    %274 = vmatprep.subr.mxu0 0.0
    %275 = vmatpush2.msra.mxu0 0.0
    %276 = vmatprep.subr.mxu0 0.0
    %277 = vmatpush2.msra.mxu0 0.0
    %278 = vmatprep.mubr.f32.mxu0 0.0
    %279 = vmatmul.mubr.f32.gmra.mxu0 %v141
    %v280 = vpop.f32.mrf.mxu0
    %v281 = vadd.f32 0.0, %v280
    %v282 = vpop.f32.mrf.mxu0
    %v283 = vadd.f32 0.0, %v282
    %284 = vdwg.mxu0
    %v286 = vsel %vm139, %v31, 0
    %288 = vmatprep.subr.mxu0 0.0
    %289 = vmatpush1.msra.mxu0 0.0
    %290 = vmatprep.subr.mxu0 0.0
    %291 = vmatpush1.msra.mxu0 0.0
    %292 = vmatprep.subr.mxu0 0.0
    %293 = vmatpush1.msra.mxu0 0.0
    %294 = vmatprep.subr.mxu0 0.0
    %295 = vmatpush1.msra.mxu0 0.0
    %296 = vmatprep.subr.mxu0 0.0
    %297 = vmatpush1.msra.mxu0 0.0
    %298 = vmatprep.subr.mxu0 0.0
    %299 = vmatpush1.msra.mxu0 0.0
    %300 = vmatprep.subr.mxu0 0.0
    %301 = vmatpush1.msra.mxu0 0.0
    %302 = vmatprep.subr.mxu0 0.0
    %303 = vmatpush1.msra.mxu0 0.0
    %304 = vmatprep.subr.mxu0 0.0
    %305 = vmatpush1.msra.mxu0 0.0
    %306 = vmatprep.subr.mxu0 0.0
    %307 = vmatpush1.msra.mxu0 0.0
    %308 = vmatprep.subr.mxu0 0.0
    %309 = vmatpush1.msra.mxu0 0.0
    %310 = vmatprep.subr.mxu0 0.0
    %311 = vmatpush1.msra.mxu0 0.0
    %312 = vmatprep.subr.mxu0 0.0
    %313 = vmatpush1.msra.mxu0 0.0
    %314 = vmatprep.subr.mxu0 0.0
    %315 = vmatpush1.msra.mxu0 0.0
    %316 = vmatprep.subr.mxu0 0.0
    %317 = vmatpush1.msra.mxu0 0.0
    %318 = vmatprep.subr.mxu0 %v136
    %319 = vmatpush1.msra.mxu0 %v135
    %320 = vmatprep.subr.mxu0 0.0
    %321 = vmatpush2.msra.mxu0 0.0
    %322 = vmatprep.subr.mxu0 0.0
    %323 = vmatpush2.msra.mxu0 0.0
    %324 = vmatprep.subr.mxu0 0.0
    %325 = vmatpush2.msra.mxu0 0.0
    %326 = vmatprep.subr.mxu0 0.0
    %327 = vmatpush2.msra.mxu0 0.0
    %328 = vmatprep.subr.mxu0 0.0
    %329 = vmatpush2.msra.mxu0 0.0
    %330 = vmatprep.subr.mxu0 0.0
    %331 = vmatpush2.msra.mxu0 0.0
    %332 = vmatprep.subr.mxu0 0.0
    %333 = vmatpush2.msra.mxu0 0.0
    %334 = vmatprep.subr.mxu0 0.0
    %335 = vmatpush2.msra.mxu0 0.0
    %336 = vmatprep.subr.mxu0 0.0
    %337 = vmatpush2.msra.mxu0 0.0
    %338 = vmatprep.subr.mxu0 0.0
    %339 = vmatpush2.msra.mxu0 0.0
    %340 = vmatprep.subr.mxu0 0.0
    %341 = vmatpush2.msra.mxu0 0.0
    %342 = vmatprep.subr.mxu0 0.0
    %343 = vmatpush2.msra.mxu0 0.0
    %344 = vmatprep.subr.mxu0 0.0
    %345 = vmatpush2.msra.mxu0 0.0
    %346 = vmatprep.subr.mxu0 0.0
    %347 = vmatpush2.msra.mxu0 0.0
    %348 = vmatprep.subr.mxu0 0.0
    %349 = vmatpush2.msra.mxu0 0.0
    %350 = vmatprep.subr.mxu0 0.0
    %351 = vmatpush2.msra.mxu0 0.0
    %352 = vmatprep.mubr.f32.mxu0 0.0
    %353 = vmatmul.mubr.f32.gmra.mxu0 %v286
    %v354 = vpop.f32.mrf.mxu0
    %v355 = vadd.f32 %v210, %v354
    %v356 = vpop.f32.mrf.mxu0
    %v357 = vadd.f32 %v212, %v356
    %358 = vdwg.mxu0
    %359 = vmatprep.subr.mxu0 0.0
    %360 = vmatpush1.msra.mxu0 0.0
    %361 = vmatprep.subr.mxu0 0.0
    %362 = vmatpush1.msra.mxu0 0.0
    %363 = vmatprep.subr.mxu0 0.0
    %364 = vmatpush1.msra.mxu0 0.0
    %365 = vmatprep.subr.mxu0 0.0
    %366 = vmatpush1.msra.mxu0 0.0
    %367 = vmatprep.subr.mxu0 0.0
    %368 = vmatpush1.msra.mxu0 0.0
    %369 = vmatprep.subr.mxu0 0.0
    %370 = vmatpush1.msra.mxu0 0.0
    %371 = vmatprep.subr.mxu0 0.0
    %372 = vmatpush1.msra.mxu0 0.0
    %373 = vmatprep.subr.mxu0 0.0
    %374 = vmatpush1.msra.mxu0 0.0
    %375 = vmatprep.subr.mxu0 0.0
    %376 = vmatpush1.msra.mxu0 0.0
    %377 = vmatprep.subr.mxu0 0.0
    %378 = vmatpush1.msra.mxu0 0.0
    %379 = vmatprep.subr.mxu0 0.0
    %380 = vmatpush1.msra.mxu0 0.0
    %381 = vmatprep.subr.mxu0 0.0
    %382 = vmatpush1.msra.mxu0 0.0
    %383 = vmatprep.subr.mxu0 0.0
    %384 = vmatpush1.msra.mxu0 0.0
    %385 = vmatprep.subr.mxu0 0.0
    %386 = vmatpush1.msra.mxu0 0.0
    %387 = vmatprep.subr.mxu0 0.0
    %388 = vmatpush1.msra.mxu0 0.0
    %389 = vmatprep.subr.mxu0 %v138
    %390 = vmatpush1.msra.mxu0 %v137
    %391 = vmatprep.subr.mxu0 0.0
    %392 = vmatpush2.msra.mxu0 0.0
    %393 = vmatprep.subr.mxu0 0.0
    %394 = vmatpush2.msra.mxu0 0.0
    %395 = vmatprep.subr.mxu0 0.0
    %396 = vmatpush2.msra.mxu0 0.0
    %397 = vmatprep.subr.mxu0 0.0
    %398 = vmatpush2.msra.mxu0 0.0
    %399 = vmatprep.subr.mxu0 0.0
    %400 = vmatpush2.msra.mxu0 0.0
    %401 = vmatprep.subr.mxu0 0.0
    %402 = vmatpush2.msra.mxu0 0.0
    %403 = vmatprep.subr.mxu0 0.0
    %404 = vmatpush2.msra.mxu0 0.0
    %405 = vmatprep.subr.mxu0 0.0
    %406 = vmatpush2.msra.mxu0 0.0
    %407 = vmatprep.subr.mxu0 0.0
    %408 = vmatpush2.msra.mxu0 0.0
    %409 = vmatprep.subr.mxu0 0.0
    %410 = vmatpush2.msra.mxu0 0.0
    %411 = vmatprep.subr.mxu0 0.0
    %412 = vmatpush2.msra.mxu0 0.0
    %413 = vmatprep.subr.mxu0 0.0
    %414 = vmatpush2.msra.mxu0 0.0
    %415 = vmatprep.subr.mxu0 0.0
    %416 = vmatpush2.msra.mxu0 0.0
    %417 = vmatprep.subr.mxu0 0.0
    %418 = vmatpush2.msra.mxu0 0.0
    %419 = vmatprep.subr.mxu0 0.0
    %420 = vmatpush2.msra.mxu0 0.0
    %421 = vmatprep.subr.mxu0 0.0
    %422 = vmatpush2.msra.mxu0 0.0
    %423 = vmatprep.mubr.f32.mxu0 0.0
    %424 = vmatmul.mubr.f32.gmra.mxu0 %v286
    %v425 = vpop.f32.mrf.mxu0
    %v426 = vadd.f32 %v281, %v425
    %v427 = vpop.f32.mrf.mxu0
    %v428 = vadd.f32 %v283, %v427
    %429 = vdwg.mxu0
    %430 = vrot.lane.b32.xlu0 %v27, 127
    %v431 = vpop.permute.xlu0 %430
    %432 = vrot.lane.b32.xlu0 %v28, 127
    %v433 = vpop.permute.xlu0 %432
    %434 = vrot.lane.b32.xlu0 %v29, 127
    %v435 = vpop.permute.xlu0 %434
    %436 = vrot.lane.b32.xlu0 %v30, 127
    %v437 = vpop.permute.xlu0 %436
    %vm438 = vcmp.lt.s32.totalorder %v38, 127
    %v439 = vsel %vm438, %v435, %v437
    %v440 = vsel %vm438, %v433, %v435
    %v441 = vsel %vm438, %v431, %v433
    %v442 = vsel %vm438, %v437, %v431
    %v443 = vsel %vm118, %v441, 0.0
    %v444 = vsel %vm119, %v440, 0.0
    %v445 = vsel %vm120, %v439, 0.0
    %v446 = vsel %vm121, %v442, 0.0
    %v448 = vsel %vm139, %v33, 0
    %450 = vmatprep.subr.mxu0 0.0
    %451 = vmatpush1.msra.mxu0 0.0
    %452 = vmatprep.subr.mxu0 0.0
    %453 = vmatpush1.msra.mxu0 0.0
    %454 = vmatprep.subr.mxu0 0.0
    %455 = vmatpush1.msra.mxu0 0.0
    %456 = vmatprep.subr.mxu0 0.0
    %457 = vmatpush1.msra.mxu0 0.0
    %458 = vmatprep.subr.mxu0 0.0
    %459 = vmatpush1.msra.mxu0 0.0
    %460 = vmatprep.subr.mxu0 0.0
    %461 = vmatpush1.msra.mxu0 0.0
    %462 = vmatprep.subr.mxu0 0.0
    %463 = vmatpush1.msra.mxu0 0.0
    %464 = vmatprep.subr.mxu0 0.0
    %465 = vmatpush1.msra.mxu0 0.0
    %466 = vmatprep.subr.mxu0 0.0
    %467 = vmatpush1.msra.mxu0 0.0
    %468 = vmatprep.subr.mxu0 0.0
    %469 = vmatpush1.msra.mxu0 0.0
    %470 = vmatprep.subr.mxu0 0.0
    %471 = vmatpush1.msra.mxu0 0.0
    %472 = vmatprep.subr.mxu0 0.0
    %473 = vmatpush1.msra.mxu0 0.0
    %474 = vmatprep.subr.mxu0 0.0
    %475 = vmatpush1.msra.mxu0 0.0
    %476 = vmatprep.subr.mxu0 0.0
    %477 = vmatpush1.msra.mxu0 0.0
    %478 = vmatprep.subr.mxu0 0.0
    %479 = vmatpush1.msra.mxu0 0.0
    %480 = vmatprep.subr.mxu0 %v444
    %481 = vmatpush1.msra.mxu0 %v443
    %482 = vmatprep.subr.mxu0 0.0
    %483 = vmatpush2.msra.mxu0 0.0
    %484 = vmatprep.subr.mxu0 0.0
    %485 = vmatpush2.msra.mxu0 0.0
    %486 = vmatprep.subr.mxu0 0.0
    %487 = vmatpush2.msra.mxu0 0.0
    %488 = vmatprep.subr.mxu0 0.0
    %489 = vmatpush2.msra.mxu0 0.0
    %490 = vmatprep.subr.mxu0 0.0
    %491 = vmatpush2.msra.mxu0 0.0
    %492 = vmatprep.subr.mxu0 0.0
    %493 = vmatpush2.msra.mxu0 0.0
    %494 = vmatprep.subr.mxu0 0.0
    %495 = vmatpush2.msra.mxu0 0.0
    %496 = vmatprep.subr.mxu0 0.0
    %497 = vmatpush2.msra.mxu0 0.0
    %498 = vmatprep.subr.mxu0 0.0
    %499 = vmatpush2.msra.mxu0 0.0
    %500 = vmatprep.subr.mxu0 0.0
    %501 = vmatpush2.msra.mxu0 0.0
    %502 = vmatprep.subr.mxu0 0.0
    %503 = vmatpush2.msra.mxu0 0.0
    %504 = vmatprep.subr.mxu0 0.0
    %505 = vmatpush2.msra.mxu0 0.0
    %506 = vmatprep.subr.mxu0 0.0
    %507 = vmatpush2.msra.mxu0 0.0
    %508 = vmatprep.subr.mxu0 0.0
    %509 = vmatpush2.msra.mxu0 0.0
    %510 = vmatprep.subr.mxu0 0.0
    %511 = vmatpush2.msra.mxu0 0.0
    %512 = vmatprep.subr.mxu0 0.0
    %513 = vmatpush2.msra.mxu0 0.0
    %514 = vmatprep.mubr.f32.mxu0 0.0
    %515 = vmatmul.mubr.f32.gmra.mxu0 %v448
    %v516 = vpop.f32.mrf.mxu0
    %v517 = vadd.f32 0.0, %v516
    %v518 = vpop.f32.mrf.mxu0
    %v519 = vadd.f32 0.0, %v518
    %520 = vdwg.mxu0
    %521 = vmatprep.subr.mxu0 0.0
    %522 = vmatpush1.msra.mxu0 0.0
    %523 = vmatprep.subr.mxu0 0.0
    %524 = vmatpush1.msra.mxu0 0.0
    %525 = vmatprep.subr.mxu0 0.0
    %526 = vmatpush1.msra.mxu0 0.0
    %527 = vmatprep.subr.mxu0 0.0
    %528 = vmatpush1.msra.mxu0 0.0
    %529 = vmatprep.subr.mxu0 0.0
    %530 = vmatpush1.msra.mxu0 0.0
    %531 = vmatprep.subr.mxu0 0.0
    %532 = vmatpush1.msra.mxu0 0.0
    %533 = vmatprep.subr.mxu0 0.0
    %534 = vmatpush1.msra.mxu0 0.0
    %535 = vmatprep.subr.mxu0 0.0
    %536 = vmatpush1.msra.mxu0 0.0
    %537 = vmatprep.subr.mxu0 0.0
    %538 = vmatpush1.msra.mxu0 0.0
    %539 = vmatprep.subr.mxu0 0.0
    %540 = vmatpush1.msra.mxu0 0.0
    %541 = vmatprep.subr.mxu0 0.0
    %542 = vmatpush1.msra.mxu0 0.0
    %543 = vmatprep.subr.mxu0 0.0
    %544 = vmatpush1.msra.mxu0 0.0
    %545 = vmatprep.subr.mxu0 0.0
    %546 = vmatpush1.msra.mxu0 0.0
    %547 = vmatprep.subr.mxu0 0.0
    %548 = vmatpush1.msra.mxu0 0.0
    %549 = vmatprep.subr.mxu0 0.0
    %550 = vmatpush1.msra.mxu0 0.0
    %551 = vmatprep.subr.mxu0 %v446
    %552 = vmatpush1.msra.mxu0 %v445
    %553 = vmatprep.subr.mxu0 0.0
    %554 = vmatpush2.msra.mxu0 0.0
    %555 = vmatprep.subr.mxu0 0.0
    %556 = vmatpush2.msra.mxu0 0.0
    %557 = vmatprep.subr.mxu0 0.0
    %558 = vmatpush2.msra.mxu0 0.0
    %559 = vmatprep.subr.mxu0 0.0
    %560 = vmatpush2.msra.mxu0 0.0
    %561 = vmatprep.subr.mxu0 0.0
    %562 = vmatpush2.msra.mxu0 0.0
    %563 = vmatprep.subr.mxu0 0.0
    %564 = vmatpush2.msra.mxu0 0.0
    %565 = vmatprep.subr.mxu0 0.0
    %566 = vmatpush2.msra.mxu0 0.0
    %567 = vmatprep.subr.mxu0 0.0
    %568 = vmatpush2.msra.mxu0 0.0
    %569 = vmatprep.subr.mxu0 0.0
    %570 = vmatpush2.msra.mxu0 0.0
    %571 = vmatprep.subr.mxu0 0.0
    %572 = vmatpush2.msra.mxu0 0.0
    %573 = vmatprep.subr.mxu0 0.0
    %574 = vmatpush2.msra.mxu0 0.0
    %575 = vmatprep.subr.mxu0 0.0
    %576 = vmatpush2.msra.mxu0 0.0
    %577 = vmatprep.subr.mxu0 0.0
    %578 = vmatpush2.msra.mxu0 0.0
    %579 = vmatprep.subr.mxu0 0.0
    %580 = vmatpush2.msra.mxu0 0.0
    %581 = vmatprep.subr.mxu0 0.0
    %582 = vmatpush2.msra.mxu0 0.0
    %583 = vmatprep.subr.mxu0 0.0
    %584 = vmatpush2.msra.mxu0 0.0
    %585 = vmatprep.mubr.f32.mxu0 0.0
    %586 = vmatmul.mubr.f32.gmra.mxu0 %v448
    %v587 = vpop.f32.mrf.mxu0
    %v588 = vadd.f32 0.0, %v587
    %v589 = vpop.f32.mrf.mxu0
    %v590 = vadd.f32 0.0, %v589
    %591 = vdwg.mxu0
    %v592 = vadd.f32 %v355, %v517
    %v593 = vadd.f32 %v357, %v519
    %v594 = vadd.f32 %v426, %v588
    %v595 = vadd.f32 %v428, %v590
    %v596 = vld [vmem:[%s3] sm:$0xff]
    %v597 = vld [vmem:[%s4] sm:$0xff]
    %v598 = vadd.f32 %v592, %v593
    %v599 = vadd.f32 %v598, %v594
    %v600 = vadd.f32 %v599, %v595
    %601 = vadd.xlane.f32.xlu0 %v600
    %v602 = vpop.xlane.xlu0 %601
    %v603 = vrcp.pop 512.0
    %v604 = vmul.f32 %v602, %v603
    %v605 = vsub.f32 %v592, %v604
    %v606 = vsub.f32 %v593, %v604
    %v607 = vsub.f32 %v594, %v604
    %v608 = vsub.f32 %v595, %v604
    %v609 = vmul.f32 %v605, %v605
    %v610 = vmul.f32 %v606, %v606
    %v611 = vmul.f32 %v607, %v607
    %v612 = vmul.f32 %v608, %v608
    %v613 = vadd.f32 %v609, %v610
    %v614 = vadd.f32 %v613, %v611
    %v615 = vadd.f32 %v614, %v612
    %616 = vadd.xlane.f32.xlu0 %v615
    %v617 = vpop.xlane.xlu0 %616
    %v618 = vmul.f32 %v617, %v603
    %v619 = vadd.f32 %v618, 1e-05
    %v620 = vrsqrt.pop %v619
    %v621 = vmul.f32 %v596, %v620
    %623 = vset.pattern.permute.xlu0 0
    %624 = vperm.xlu0 %623, %v621
    %v625 = vpop.permute.xlu0 %624
    %v627 = vmul.f32 %v605, %v625
    %v628 = vmul.f32 %v606, %v625
    %v629 = vmul.f32 %v607, %v625
    %v630 = vmul.f32 %v608, %v625
    %632 = vset.pattern.permute.xlu0 0
    %633 = vperm.xlu0 %632, %v597
    %v634 = vpop.permute.xlu0 %633
    %v636 = vadd.f32 %v627, %v634
    %v637 = vadd.f32 %v628, %v634
    %v638 = vadd.f32 %v629, %v634
    %v639 = vadd.f32 %v630, %v634
    %v640 = vmax.f32 %v636, 0.0
    %v641 = vmax.f32 %v637, 0.0
    %v642 = vmax.f32 %v638, 0.0
    %v643 = vmax.f32 %v639, 0.0
    %644 = vrot.lane.b32.xlu0 %v640, 1
    %v645 = vpop.permute.xlu0 %644
    %646 = vrot.lane.b32.xlu0 %v641, 1
    %v647 = vpop.permute.xlu0 %646
    %648 = vrot.lane.b32.xlu0 %v642, 1
    %v649 = vpop.permute.xlu0 %648
    %650 = vrot.lane.b32.xlu0 %v643, 1
    %v651 = vpop.permute.xlu0 %650
    %v652 = vsel %vm130, %v649, %v651
    %v653 = vsel %vm130, %v647, %v649
    %v654 = vsel %vm130, %v645, %v647
    %v655 = vsel %vm130, %v651, %v645
    %v656 = vsel %vm102, %v655, 0.0
    %v657 = vsel %vm103, %v654, 0.0
    %v658 = vsel %vm104, %v653, 0.0
    %v659 = vsel %vm105, %v652, 0.0
    %v661 = vsel %vm139, %v35, 0
    %663 = vmatprep.subr.mxu0 0.0
    %664 = vmatpush1.msra.mxu0 0.0
    %665 = vmatprep.subr.mxu0 0.0
    %666 = vmatpush1.msra.mxu0 0.0
    %667 = vmatprep.subr.mxu0 0.0
    %668 = vmatpush1.msra.mxu0 0.0
    %669 = vmatprep.subr.mxu0 0.0
    %670 = vmatpush1.msra.mxu0 0.0
    %671 = vmatprep.subr.mxu0 0.0
    %672 = vmatpush1.msra.mxu0 0.0
    %673 = vmatprep.subr.mxu0 0.0
    %674 = vmatpush1.msra.mxu0 0.0
    %675 = vmatprep.subr.mxu0 0.0
    %676 = vmatpush1.msra.mxu0 0.0
    %677 = vmatprep.subr.mxu0 0.0
    %678 = vmatpush1.msra.mxu0 0.0
    %679 = vmatprep.subr.mxu0 0.0
    %680 = vmatpush1.msra.mxu0 0.0
    %681 = vmatprep.subr.mxu0 0.0
    %682 = vmatpush1.msra.mxu0 0.0
    %683 = vmatprep.subr.mxu0 0.0
    %684 = vmatpush1.msra.mxu0 0.0
    %685 = vmatprep.subr.mxu0 0.0
    %686 = vmatpush1.msra.mxu0 0.0
    %687 = vmatprep.subr.mxu0 0.0
    %688 = vmatpush1.msra.mxu0 0.0
    %689 = vmatprep.subr.mxu0 0.0
    %690 = vmatpush1.msra.mxu0 0.0
    %691 = vmatprep.subr.mxu0 0.0
    %692 = vmatpush1.msra.mxu0 0.0
    %693 = vmatprep.subr.mxu0 %v641
    %694 = vmatpush1.msra.mxu0 %v640
    %695 = vmatprep.subr.mxu0 0.0
    %696 = vmatpush2.msra.mxu0 0.0
    %697 = vmatprep.subr.mxu0 0.0
    %698 = vmatpush2.msra.mxu0 0.0
    %699 = vmatprep.subr.mxu0 0.0
    %700 = vmatpush2.msra.mxu0 0.0
    %701 = vmatprep.subr.mxu0 0.0
    %702 = vmatpush2.msra.mxu0 0.0
    %703 = vmatprep.subr.mxu0 0.0
    %704 = vmatpush2.msra.mxu0 0.0
    %705 = vmatprep.subr.mxu0 0.0
    %706 = vmatpush2.msra.mxu0 0.0
    %707 = vmatprep.subr.mxu0 0.0
    %708 = vmatpush2.msra.mxu0 0.0
    %709 = vmatprep.subr.mxu0 0.0
    %710 = vmatpush2.msra.mxu0 0.0
    %711 = vmatprep.subr.mxu0 0.0
    %712 = vmatpush2.msra.mxu0 0.0
    %713 = vmatprep.subr.mxu0 0.0
    %714 = vmatpush2.msra.mxu0 0.0
    %715 = vmatprep.subr.mxu0 0.0
    %716 = vmatpush2.msra.mxu0 0.0
    %717 = vmatprep.subr.mxu0 0.0
    %718 = vmatpush2.msra.mxu0 0.0
    %719 = vmatprep.subr.mxu0 0.0
    %720 = vmatpush2.msra.mxu0 0.0
    %721 = vmatprep.subr.mxu0 0.0
    %722 = vmatpush2.msra.mxu0 0.0
    %723 = vmatprep.subr.mxu0 0.0
    %724 = vmatpush2.msra.mxu0 0.0
    %725 = vmatprep.subr.mxu0 0.0
    %726 = vmatpush2.msra.mxu0 0.0
    %727 = vmatprep.mubr.f32.mxu0 0.0
    %728 = vmatmul.mubr.f32.gmra.mxu0 %v661
    %v729 = vpop.f32.mrf.mxu0
    %v730 = vadd.f32 0.0, %v729
    %v731 = vpop.f32.mrf.mxu0
    %v732 = vadd.f32 0.0, %v731
    %733 = vdwg.mxu0
    %734 = vmatprep.subr.mxu0 0.0
    %735 = vmatpush1.msra.mxu0 0.0
    %736 = vmatprep.subr.mxu0 0.0
    %737 = vmatpush1.msra.mxu0 0.0
    %738 = vmatprep.subr.mxu0 0.0
    %739 = vmatpush1.msra.mxu0 0.0
    %740 = vmatprep.subr.mxu0 0.0
    %741 = vmatpush1.msra.mxu0 0.0
    %742 = vmatprep.subr.mxu0 0.0
    %743 = vmatpush1.msra.mxu0 0.0
    %744 = vmatprep.subr.mxu0 0.0
    %745 = vmatpush1.msra.mxu0 0.0
    %746 = vmatprep.subr.mxu0 0.0
    %747 = vmatpush1.msra.mxu0 0.0
    %748 = vmatprep.subr.mxu0 0.0
    %749 = vmatpush1.msra.mxu0 0.0
    %750 = vmatprep.subr.mxu0 0.0
    %751 = vmatpush1.msra.mxu0 0.0
    %752 = vmatprep.subr.mxu0 0.0
    %753 = vmatpush1.msra.mxu0 0.0
    %754 = vmatprep.subr.mxu0 0.0
    %755 = vmatpush1.msra.mxu0 0.0
    %756 = vmatprep.subr.mxu0 0.0
    %757 = vmatpush1.msra.mxu0 0.0
    %758 = vmatprep.subr.mxu0 0.0
    %759 = vmatpush1.msra.mxu0 0.0
    %760 = vmatprep.subr.mxu0 0.0
    %761 = vmatpush1.msra.mxu0 0.0
    %762 = vmatprep.subr.mxu0 0.0
    %763 = vmatpush1.msra.mxu0 0.0
    %764 = vmatprep.subr.mxu0 %v643
    %765 = vmatpush1.msra.mxu0 %v642
    %766 = vmatprep.subr.mxu0 0.0
    %767 = vmatpush2.msra.mxu0 0.0
    %768 = vmatprep.subr.mxu0 0.0
    %769 = vmatpush2.msra.mxu0 0.0
    %770 = vmatprep.subr.mxu0 0.0
    %771 = vmatpush2.msra.mxu0 0.0
    %772 = vmatprep.subr.mxu0 0.0
    %773 = vmatpush2.msra.mxu0 0.0
    %774 = vmatprep.subr.mxu0 0.0
    %775 = vmatpush2.msra.mxu0 0.0
    %776 = vmatprep.subr.mxu0 0.0
    %777 = vmatpush2.msra.mxu0 0.0
    %778 = vmatprep.subr.mxu0 0.0
    %779 = vmatpush2.msra.mxu0 0.0
    %780 = vmatprep.subr.mxu0 0.0
    %781 = vmatpush2.msra.mxu0 0.0
    %782 = vmatprep.subr.mxu0 0.0
    %783 = vmatpush2.msra.mxu0 0.0
    %784 = vmatprep.subr.mxu0 0.0
    %785 = vmatpush2.msra.mxu0 0.0
    %786 = vmatprep.subr.mxu0 0.0
    %787 = vmatpush2.msra.mxu0 0.0
    %788 = vmatprep.subr.mxu0 0.0
    %789 = vmatpush2.msra.mxu0 0.0
    %790 = vmatprep.subr.mxu0 0.0
    %791 = vmatpush2.msra.mxu0 0.0
    %792 = vmatprep.subr.mxu0 0.0
    %793 = vmatpush2.msra.mxu0 0.0
    %794 = vmatprep.subr.mxu0 0.0
    %795 = vmatpush2.msra.mxu0 0.0
    %796 = vmatprep.subr.mxu0 0.0
    %797 = vmatpush2.msra.mxu0 0.0
    %798 = vmatprep.mubr.f32.mxu0 0.0
    %799 = vmatmul.mubr.f32.gmra.mxu0 %v661
    %v800 = vpop.f32.mrf.mxu0
    %v801 = vadd.f32 0.0, %v800
    %v802 = vpop.f32.mrf.mxu0
    %v803 = vadd.f32 0.0, %v802
    %804 = vdwg.mxu0
    %v806 = vsel %vm139, %v34, 0
    %808 = vmatprep.subr.mxu0 0.0
    %809 = vmatpush1.msra.mxu0 0.0
    %810 = vmatprep.subr.mxu0 0.0
    %811 = vmatpush1.msra.mxu0 0.0
    %812 = vmatprep.subr.mxu0 0.0
    %813 = vmatpush1.msra.mxu0 0.0
    %814 = vmatprep.subr.mxu0 0.0
    %815 = vmatpush1.msra.mxu0 0.0
    %816 = vmatprep.subr.mxu0 0.0
    %817 = vmatpush1.msra.mxu0 0.0
    %818 = vmatprep.subr.mxu0 0.0
    %819 = vmatpush1.msra.mxu0 0.0
    %820 = vmatprep.subr.mxu0 0.0
    %821 = vmatpush1.msra.mxu0 0.0
    %822 = vmatprep.subr.mxu0 0.0
    %823 = vmatpush1.msra.mxu0 0.0
    %824 = vmatprep.subr.mxu0 0.0
    %825 = vmatpush1.msra.mxu0 0.0
    %826 = vmatprep.subr.mxu0 0.0
    %827 = vmatpush1.msra.mxu0 0.0
    %828 = vmatprep.subr.mxu0 0.0
    %829 = vmatpush1.msra.mxu0 0.0
    %830 = vmatprep.subr.mxu0 0.0
    %831 = vmatpush1.msra.mxu0 0.0
    %832 = vmatprep.subr.mxu0 0.0
    %833 = vmatpush1.msra.mxu0 0.0
    %834 = vmatprep.subr.mxu0 0.0
    %835 = vmatpush1.msra.mxu0 0.0
    %836 = vmatprep.subr.mxu0 0.0
    %837 = vmatpush1.msra.mxu0 0.0
    %838 = vmatprep.subr.mxu0 %v657
    %839 = vmatpush1.msra.mxu0 %v656
    %840 = vmatprep.subr.mxu0 0.0
    %841 = vmatpush2.msra.mxu0 0.0
    %842 = vmatprep.subr.mxu0 0.0
    %843 = vmatpush2.msra.mxu0 0.0
    %844 = vmatprep.subr.mxu0 0.0
    %845 = vmatpush2.msra.mxu0 0.0
    %846 = vmatprep.subr.mxu0 0.0
    %847 = vmatpush2.msra.mxu0 0.0
    %848 = vmatprep.subr.mxu0 0.0
    %849 = vmatpush2.msra.mxu0 0.0
    %850 = vmatprep.subr.mxu0 0.0
    %851 = vmatpush2.msra.mxu0 0.0
    %852 = vmatprep.subr.mxu0 0.0
    %853 = vmatpush2.msra.mxu0 0.0
    %854 = vmatprep.subr.mxu0 0.0
    %855 = vmatpush2.msra.mxu0 0.0
    %856 = vmatprep.subr.mxu0 0.0
    %857 = vmatpush2.msra.mxu0 0.0
    %858 = vmatprep.subr.mxu0 0.0
    %859 = vmatpush2.msra.mxu0 0.0
    %860 = vmatprep.subr.mxu0 0.0
    %861 = vmatpush2.msra.mxu0 0.0
    %862 = vmatprep.subr.mxu0 0.0
    %863 = vmatpush2.msra.mxu0 0.0
    %864 = vmatprep.subr.mxu0 0.0
    %865 = vmatpush2.msra.mxu0 0.0
    %866 = vmatprep.subr.mxu0 0.0
    %867 = vmatpush2.msra.mxu0 0.0
    %868 = vmatprep.subr.mxu0 0.0
    %869 = vmatpush2.msra.mxu0 0.0
    %870 = vmatprep.subr.mxu0 0.0
    %871 = vmatpush2.msra.mxu0 0.0
    %872 = vmatprep.mubr.f32.mxu0 0.0
    %873 = vmatmul.mubr.f32.gmra.mxu0 %v806
    %v874 = vpop.f32.mrf.mxu0
    %v875 = vadd.f32 %v730, %v874
    %v876 = vpop.f32.mrf.mxu0
    %v877 = vadd.f32 %v732, %v876
    %878 = vdwg.mxu0
    %879 = vmatprep.subr.mxu0 0.0
    %880 = vmatpush1.msra.mxu0 0.0
    %881 = vmatprep.subr.mxu0 0.0
    %882 = vmatpush1.msra.mxu0 0.0
    %883 = vmatprep.subr.mxu0 0.0
    %884 = vmatpush1.msra.mxu0 0.0
    %885 = vmatprep.subr.mxu0 0.0
    %886 = vmatpush1.msra.mxu0 0.0
    %887 = vmatprep.subr.mxu0 0.0
    %888 = vmatpush1.msra.mxu0 0.0
    %889 = vmatprep.subr.mxu0 0.0
    %890 = vmatpush1.msra.mxu0 0.0
    %891 = vmatprep.subr.mxu0 0.0
    %892 = vmatpush1.msra.mxu0 0.0
    %893 = vmatprep.subr.mxu0 0.0
    %894 = vmatpush1.msra.mxu0 0.0
    %895 = vmatprep.subr.mxu0 0.0
    %896 = vmatpush1.msra.mxu0 0.0
    %897 = vmatprep.subr.mxu0 0.0
    %898 = vmatpush1.msra.mxu0 0.0
    %899 = vmatprep.subr.mxu0 0.0
    %900 = vmatpush1.msra.mxu0 0.0
    %901 = vmatprep.subr.mxu0 0.0
    %902 = vmatpush1.msra.mxu0 0.0
    %903 = vmatprep.subr.mxu0 0.0
    %904 = vmatpush1.msra.mxu0 0.0
    %905 = vmatprep.subr.mxu0 0.0
    %906 = vmatpush1.msra.mxu0 0.0
    %907 = vmatprep.subr.mxu0 0.0
    %908 = vmatpush1.msra.mxu0 0.0
    %909 = vmatprep.subr.mxu0 %v659
    %910 = vmatpush1.msra.mxu0 %v658
    %911 = vmatprep.subr.mxu0 0.0
    %912 = vmatpush2.msra.mxu0 0.0
    %913 = vmatprep.subr.mxu0 0.0
    %914 = vmatpush2.msra.mxu0 0.0
    %915 = vmatprep.subr.mxu0 0.0
    %916 = vmatpush2.msra.mxu0 0.0
    %917 = vmatprep.subr.mxu0 0.0
    %918 = vmatpush2.msra.mxu0 0.0
    %919 = vmatprep.subr.mxu0 0.0
    %920 = vmatpush2.msra.mxu0 0.0
    %921 = vmatprep.subr.mxu0 0.0
    %922 = vmatpush2.msra.mxu0 0.0
    %923 = vmatprep.subr.mxu0 0.0
    %924 = vmatpush2.msra.mxu0 0.0
    %925 = vmatprep.subr.mxu0 0.0
    %926 = vmatpush2.msra.mxu0 0.0
    %927 = vmatprep.subr.mxu0 0.0
    %928 = vmatpush2.msra.mxu0 0.0
    %929 = vmatprep.subr.mxu0 0.0
    %930 = vmatpush2.msra.mxu0 0.0
    %931 = vmatprep.subr.mxu0 0.0
    %932 = vmatpush2.msra.mxu0 0.0
    %933 = vmatprep.subr.mxu0 0.0
    %934 = vmatpush2.msra.mxu0 0.0
    %935 = vmatprep.subr.mxu0 0.0
    %936 = vmatpush2.msra.mxu0 0.0
    %937 = vmatprep.subr.mxu0 0.0
    %938 = vmatpush2.msra.mxu0 0.0
    %939 = vmatprep.subr.mxu0 0.0
    %940 = vmatpush2.msra.mxu0 0.0
    %941 = vmatprep.subr.mxu0 0.0
    %942 = vmatpush2.msra.mxu0 0.0
    %943 = vmatprep.mubr.f32.mxu0 0.0
    %944 = vmatmul.mubr.f32.gmra.mxu0 %v806
    %v945 = vpop.f32.mrf.mxu0
    %v946 = vadd.f32 %v801, %v945
    %v947 = vpop.f32.mrf.mxu0
    %v948 = vadd.f32 %v803, %v947
    %949 = vdwg.mxu0
    %950 = vrot.lane.b32.xlu0 %v640, 127
    %v951 = vpop.permute.xlu0 %950
    %952 = vrot.lane.b32.xlu0 %v641, 127
    %v953 = vpop.permute.xlu0 %952
    %954 = vrot.lane.b32.xlu0 %v642, 127
    %v955 = vpop.permute.xlu0 %954
    %956 = vrot.lane.b32.xlu0 %v643, 127
    %v957 = vpop.permute.xlu0 %956
    %v958 = vsel %vm438, %v955, %v957
    %v959 = vsel %vm438, %v953, %v955
    %v960 = vsel %vm438, %v951, %v953
    %v961 = vsel %vm438, %v957, %v951
    %v962 = vsel %vm118, %v960, 0.0
    %v963 = vsel %vm119, %v959, 0.0
    %v964 = vsel %vm120, %v958, 0.0
    %v965 = vsel %vm121, %v961, 0.0
    %v967 = vsel %vm139, %v36, 0
    %969 = vmatprep.subr.mxu0 0.0
    %970 = vmatpush1.msra.mxu0 0.0
    %971 = vmatprep.subr.mxu0 0.0
    %972 = vmatpush1.msra.mxu0 0.0
    %973 = vmatprep.subr.mxu0 0.0
    %974 = vmatpush1.msra.mxu0 0.0
    %975 = vmatprep.subr.mxu0 0.0
    %976 = vmatpush1.msra.mxu0 0.0
    %977 = vmatprep.subr.mxu0 0.0
    %978 = vmatpush1.msra.mxu0 0.0
    %979 = vmatprep.subr.mxu0 0.0
    %980 = vmatpush1.msra.mxu0 0.0
    %981 = vmatprep.subr.mxu0 0.0
    %982 = vmatpush1.msra.mxu0 0.0
    %983 = vmatprep.subr.mxu0 0.0
    %984 = vmatpush1.msra.mxu0 0.0
    %985 = vmatprep.subr.mxu0 0.0
    %986 = vmatpush1.msra.mxu0 0.0
    %987 = vmatprep.subr.mxu0 0.0
    %988 = vmatpush1.msra.mxu0 0.0
    %989 = vmatprep.subr.mxu0 0.0
    %990 = vmatpush1.msra.mxu0 0.0
    %991 = vmatprep.subr.mxu0 0.0
    %992 = vmatpush1.msra.mxu0 0.0
    %993 = vmatprep.subr.mxu0 0.0
    %994 = vmatpush1.msra.mxu0 0.0
    %995 = vmatprep.subr.mxu0 0.0
    %996 = vmatpush1.msra.mxu0 0.0
    %997 = vmatprep.subr.mxu0 0.0
    %998 = vmatpush1.msra.mxu0 0.0
    %999 = vmatprep.subr.mxu0 %v963
    %1000 = vmatpush1.msra.mxu0 %v962
    %1001 = vmatprep.subr.mxu0 0.0
    %1002 = vmatpush2.msra.mxu0 0.0
    %1003 = vmatprep.subr.mxu0 0.0
    %1004 = vmatpush2.msra.mxu0 0.0
    %1005 = vmatprep.subr.mxu0 0.0
    %1006 = vmatpush2.msra.mxu0 0.0
    %1007 = vmatprep.subr.mxu0 0.0
    %1008 = vmatpush2.msra.mxu0 0.0
    %1009 = vmatprep.subr.mxu0 0.0
    %1010 = vmatpush2.msra.mxu0 0.0
    %1011 = vmatprep.subr.mxu0 0.0
    %1012 = vmatpush2.msra.mxu0 0.0
    %1013 = vmatprep.subr.mxu0 0.0
    %1014 = vmatpush2.msra.mxu0 0.0
    %1015 = vmatprep.subr.mxu0 0.0
    %1016 = vmatpush2.msra.mxu0 0.0
    %1017 = vmatprep.subr.mxu0 0.0
    %1018 = vmatpush2.msra.mxu0 0.0
    %1019 = vmatprep.subr.mxu0 0.0
    %1020 = vmatpush2.msra.mxu0 0.0
    %1021 = vmatprep.subr.mxu0 0.0
    %1022 = vmatpush2.msra.mxu0 0.0
    %1023 = vmatprep.subr.mxu0 0.0
    %1024 = vmatpush2.msra.mxu0 0.0
    %1025 = vmatprep.subr.mxu0 0.0
    %1026 = vmatpush2.msra.mxu0 0.0
    %1027 = vmatprep.subr.mxu0 0.0
    %1028 = vmatpush2.msra.mxu0 0.0
    %1029 = vmatprep.subr.mxu0 0.0
    %1030 = vmatpush2.msra.mxu0 0.0
    %1031 = vmatprep.subr.mxu0 0.0
    %1032 = vmatpush2.msra.mxu0 0.0
    %1033 = vmatprep.mubr.f32.mxu0 0.0
    %1034 = vmatmul.mubr.f32.gmra.mxu0 %v967
    %v1035 = vpop.f32.mrf.mxu0
    %v1036 = vadd.f32 0.0, %v1035
    %v1037 = vpop.f32.mrf.mxu0
    %v1038 = vadd.f32 0.0, %v1037
    %1039 = vdwg.mxu0
    %1040 = vmatprep.subr.mxu0 0.0
    %1041 = vmatpush1.msra.mxu0 0.0
    %1042 = vmatprep.subr.mxu0 0.0
    %1043 = vmatpush1.msra.mxu0 0.0
    %1044 = vmatprep.subr.mxu0 0.0
    %1045 = vmatpush1.msra.mxu0 0.0
    %1046 = vmatprep.subr.mxu0 0.0
    %1047 = vmatpush1.msra.mxu0 0.0
    %1048 = vmatprep.subr.mxu0 0.0
    %1049 = vmatpush1.msra.mxu0 0.0
    %1050 = vmatprep.subr.mxu0 0.0
    %1051 = vmatpush1.msra.mxu0 0.0
    %1052 = vmatprep.subr.mxu0 0.0
    %1053 = vmatpush1.msra.mxu0 0.0
    %1054 = vmatprep.subr.mxu0 0.0
    %1055 = vmatpush1.msra.mxu0 0.0
    %1056 = vmatprep.subr.mxu0 0.0
    %1057 = vmatpush1.msra.mxu0 0.0
    %1058 = vmatprep.subr.mxu0 0.0
    %1059 = vmatpush1.msra.mxu0 0.0
    %1060 = vmatprep.subr.mxu0 0.0
    %1061 = vmatpush1.msra.mxu0 0.0
    %1062 = vmatprep.subr.mxu0 0.0
    %1063 = vmatpush1.msra.mxu0 0.0
    %1064 = vmatprep.subr.mxu0 0.0
    %1065 = vmatpush1.msra.mxu0 0.0
    %1066 = vmatprep.subr.mxu0 0.0
    %1067 = vmatpush1.msra.mxu0 0.0
    %1068 = vmatprep.subr.mxu0 0.0
    %1069 = vmatpush1.msra.mxu0 0.0
    %1070 = vmatprep.subr.mxu0 %v965
    %1071 = vmatpush1.msra.mxu0 %v964
    %1072 = vmatprep.subr.mxu0 0.0
    %1073 = vmatpush2.msra.mxu0 0.0
    %1074 = vmatprep.subr.mxu0 0.0
    %1075 = vmatpush2.msra.mxu0 0.0
    %1076 = vmatprep.subr.mxu0 0.0
    %1077 = vmatpush2.msra.mxu0 0.0
    %1078 = vmatprep.subr.mxu0 0.0
    %1079 = vmatpush2.msra.mxu0 0.0
    %1080 = vmatprep.subr.mxu0 0.0
    %1081 = vmatpush2.msra.mxu0 0.0
    %1082 = vmatprep.subr.mxu0 0.0
    %1083 = vmatpush2.msra.mxu0 0.0
    %1084 = vmatprep.subr.mxu0 0.0
    %1085 = vmatpush2.msra.mxu0 0.0
    %1086 = vmatprep.subr.mxu0 0.0
    %1087 = vmatpush2.msra.mxu0 0.0
    %1088 = vmatprep.subr.mxu0 0.0
    %1089 = vmatpush2.msra.mxu0 0.0
    %1090 = vmatprep.subr.mxu0 0.0
    %1091 = vmatpush2.msra.mxu0 0.0
    %1092 = vmatprep.subr.mxu0 0.0
    %1093 = vmatpush2.msra.mxu0 0.0
    %1094 = vmatprep.subr.mxu0 0.0
    %1095 = vmatpush2.msra.mxu0 0.0
    %1096 = vmatprep.subr.mxu0 0.0
    %1097 = vmatpush2.msra.mxu0 0.0
    %1098 = vmatprep.subr.mxu0 0.0
    %1099 = vmatpush2.msra.mxu0 0.0
    %1100 = vmatprep.subr.mxu0 0.0
    %1101 = vmatpush2.msra.mxu0 0.0
    %1102 = vmatprep.subr.mxu0 0.0
    %1103 = vmatpush2.msra.mxu0 0.0
    %1104 = vmatprep.mubr.f32.mxu0 0.0
    %1105 = vmatmul.mubr.f32.gmra.mxu0 %v967
    %v1106 = vpop.f32.mrf.mxu0
    %v1107 = vadd.f32 0.0, %v1106
    %v1108 = vpop.f32.mrf.mxu0
    %v1109 = vadd.f32 0.0, %v1108
    %1110 = vdwg.mxu0
    %v1111 = vadd.f32 %v875, %v1036
    %v1112 = vadd.f32 %v877, %v1038
    %v1113 = vadd.f32 %v946, %v1107
    %v1114 = vadd.f32 %v948, %v1109
    %v1115 = vld [vmem:[%s5] sm:$0xff]
    %v1116 = vld [vmem:[%s6] sm:$0xff]
    %v1117 = vadd.f32 %v1111, %v1112
    %v1118 = vadd.f32 %v1117, %v1113
    %v1119 = vadd.f32 %v1118, %v1114
    %1120 = vadd.xlane.f32.xlu0 %v1119
    %v1121 = vpop.xlane.xlu0 %1120
    %v1122 = vmul.f32 %v1121, %v603
    %v1123 = vsub.f32 %v1111, %v1122
    %v1124 = vsub.f32 %v1112, %v1122
    %v1125 = vsub.f32 %v1113, %v1122
    %v1126 = vsub.f32 %v1114, %v1122
    %v1127 = vmul.f32 %v1123, %v1123
    %v1128 = vmul.f32 %v1124, %v1124
    %v1129 = vmul.f32 %v1125, %v1125
    %v1130 = vmul.f32 %v1126, %v1126
    %v1131 = vadd.f32 %v1127, %v1128
    %v1132 = vadd.f32 %v1131, %v1129
    %v1133 = vadd.f32 %v1132, %v1130
    %1134 = vadd.xlane.f32.xlu0 %v1133
    %v1135 = vpop.xlane.xlu0 %1134
    %v1136 = vmul.f32 %v1135, %v603
    %v1137 = vadd.f32 %v1136, 1e-05
    %v1138 = vrsqrt.pop %v1137
    %v1139 = vmul.f32 %v1115, %v1138
    %1141 = vset.pattern.permute.xlu0 0
    %1142 = vperm.xlu0 %1141, %v1139
    %v1143 = vpop.permute.xlu0 %1142
    %v1145 = vmul.f32 %v1123, %v1143
    %v1146 = vmul.f32 %v1124, %v1143
    %v1147 = vmul.f32 %v1125, %v1143
    %v1148 = vmul.f32 %v1126, %v1143
    %1150 = vset.pattern.permute.xlu0 0
    %1151 = vperm.xlu0 %1150, %v1116
    %v1152 = vpop.permute.xlu0 %1151
    %v1154 = vadd.f32 %v1145, %v1152
    %v1155 = vadd.f32 %v1146, %v1152
    %v1156 = vadd.f32 %v1147, %v1152
    %v1157 = vadd.f32 %v1148, %v1152
    %v1158 = vadd.f32 %v1154, %v27
    %v1159 = vadd.f32 %v1155, %v28
    %v1160 = vadd.f32 %v1156, %v29
    %v1161 = vadd.f32 %v1157, %v30
    %v1162 = vmax.f32 %v1158, 0.0
    %v1163 = vmax.f32 %v1159, 0.0
    %v1164 = vmax.f32 %v1160, 0.0
    %v1165 = vmax.f32 %v1161, 0.0
    %1166 = vst [vmem:[#allocation2] sm:$0xff] %v1162
    %1167 = vst [vmem:[#allocation2 + $0x8] sm:$0xff] %v1163
    %1168 = vst [vmem:[#allocation2 + $0x10] sm:$0xff] %v1164
    %1169 = vst [vmem:[#allocation2 + $0x18] sm:$0xff] %v1165
    // Predicated region
    $region30: #{tpu_custom_call.1} parent=1 // pred_check
      _
    $region31: #{tpu_custom_call.1} parent=1 // pred_check_branch
      %1171 = sbr.rel (0) target = $region33
    $region32: #{tpu_custom_call.1} parent=1 // pred_region
      %s1173 = ssub.s32 512, 512
      %1174 = vsyncadd [#allocation3], %s1173
      %s1176 = sshll.u32 [#allocation2], 4
      %s1177 = int_to_ptr.vmem [resolvable:$true] %s1176
      %1179 = dma.vmem_to_hbm [thread:$0]  %s1177, 512, %s7, [#allocation3]
    $region33: #{tpu_custom_call.1} parent=1 // pred_fallthru
      _
    // Predicated region
    $region34: #{tpu_custom_call.1} parent=1 // pred_check
      _
    $region35: #{tpu_custom_call.1} parent=1 // pred_check_branch
      %1181 = sbr.rel (0) target = $region37
    $region36: #{tpu_custom_call.1} parent=1 // pred_region
      %1182 = dma.done [#allocation3], 512
    $region37: #{tpu_custom_call.1} parent=1 // pred_fallthru
      _
    %1183 = vsyncpa [#allocation3], 1

</llo_original>
